<compile_context>
chip_gen: v6e
topology: v6e:2x2x1
jax: 0.10.0
libtpu: 0.0.40
codegen_flags: <defaults>
</compile_context>

<pallas_src>
import functools

import jax
import jax.numpy as jnp
import numpy as np
from jax import lax
from jax.experimental import pallas as pl
from jax.experimental.pallas import tpu as pltpu

BN_EPS = 1e-5


# ---------------------------------------------------------------------------
# pltpu.roll sign-convention probe (run once at import)
# ---------------------------------------------------------------------------
def _detect_roll_convention():
    """True iff pltpu.roll(x, shift, axis) matches jnp.roll's sign convention."""
    def k(x_ref, o_ref):
        o_ref[...] = pltpu.roll(x_ref[...], shift=1, axis=0)

    x = jnp.arange(8 * 128, dtype=jnp.float32).reshape(8, 128)
    out = pl.pallas_call(
        k,
        grid=(1,),
        in_specs=[pl.BlockSpec((8, 128), lambda i: (0, 0))],
        out_specs=pl.BlockSpec((8, 128), lambda i: (0, 0)),
        out_shape=jax.ShapeDtypeStruct((8, 128), jnp.float32),
    )(x)
    return bool(out[1, 0] == x[0, 0])


_ROLL_LIKE_JNP = _detect_roll_convention()


# ---------------------------------------------------------------------------
# in-kernel helpers
# ---------------------------------------------------------------------------
def _bn(acc, gamma, beta, *, relu):
    """Training-mode BatchNorm over rows (two-pass variance, f32)."""
    n = acc.shape[0]
    mean = jnp.sum(acc, axis=0, keepdims=True) * (1.0 / n)
    d = acc - mean
    var = jnp.sum(d * d, axis=0, keepdims=True) * (1.0 / n)
    y = d * (gamma * lax.rsqrt(var + BN_EPS)) + beta
    return jnp.maximum(y, 0.0) if relu else y


# ---------------------------------------------------------------------------
# the single fused kernel (grid = (num_layer_blocks,))
# ---------------------------------------------------------------------------
def _fused_kernel(x0_ref, masks_ref, wc1_ref, bnc1_ref, wres_ref, bns_ref,
                  wc2_ref, misc_ref, w1t_ref, b1_ref, w2_ref,
                  o_ref, y_scr, tap_scr, *, B, H, W, C, CINP, LPS):
    s = pl.program_id(0)
    M = y_scr.shape[0]
    HW = H * W
    masks = masks_ref[...]                                  # (M, 8) f32 in {0, 1}

    def conv3x3(x, w2d, Cx):
        """3x3 same-pad conv of the (M, Cx) f32 activation against w2d ((9*Cx, Cout)
        bf16) as ONE matmul: the 9 shifted+masked taps are stored side-by-side into
        the (M, 9*C) bf16 scratch (K-concat layout, rolls done in f32, single bf16
        cast at the store)."""
        t = mi = 0
        for dh in (-1, 0, 1):
            for dw in (-1, 0, 1):
                if dh == 0 and dw == 0:
                    src = x
                else:
                    sh = dh * W + dw
                    shift = ((-sh) % M) if _ROLL_LIKE_JNP else (sh % M)
                    src = pltpu.roll(x, shift=shift, axis=0) * masks[:, mi:mi + 1]
                    mi += 1
                tap_scr[:, t * Cx:(t + 1) * Cx] = src.astype(jnp.bfloat16)
                t += 1
        return jnp.dot(tap_scr[:, :9 * Cx], w2d, preferred_element_type=jnp.float32)

    # grid step 0: conv1 (3x3, pad 1) + BN + ReLU on the channel-padded input
    @pl.when(s == 0)
    def _():
        acc = conv3x3(x0_ref[...], wc1_ref[...], CINP)
        p = bnc1_ref[...]                                   # (2, C): [gamma, beta]
        y_scr[...] = _bn(acc, p[0:1], p[1:2], relu=True)

    # LPS residual layers per grid step; the activation carry stays in VMEM.
    y = y_scr[...]
    for j in range(LPS):
        p = bns_ref[j]                                      # (4, C): [g1, b1, g2, b2]
        h = _bn(conv3x3(y, wres_ref[2 * j], C), p[0:1], p[1:2], relu=True)
        h = _bn(conv3x3(h, wres_ref[2 * j + 1], C), p[2:3], p[3:4], relu=False)
        y = jnp.maximum(h + y, 0.0)
    y_scr[...] = y

    # last grid step: fused head -> (B, 1) output (no (M, C) HBM round trip)
    @pl.when(s == pl.num_programs(0) - 1)
    def _():
        m = misc_ref[...]                                   # (1,128): [g2, b2, b_lin2, 0...]
        z = jnp.sum(y * wc2_ref[...], axis=1, keepdims=True)          # 1x1 conv, (M, 1)
        zr = _bn(z, m[:, 0:1], m[:, 1:2], relu=True)                  # BN over B*H*W rows
        zw = zr * w1t_ref[...]                                        # (M, 64)
        # flatten (B,1,H,W)->(B,HW) + lin1 via per-batch row reductions (f32, no
        # sublane->lane reshape and no MXU precision ambiguity).
        h1 = jnp.concatenate(
            [jnp.sum(zw[b * HW:(b + 1) * HW, :], axis=0, keepdims=True)
             for b in range(B)], axis=0)                              # (B, 64)
        h1 = jnp.maximum(h1 + b1_ref[...], 0.0)
        o_ref[...] = jnp.tanh(
            jnp.sum(h1 * w2_ref[...], axis=1, keepdims=True) + m[:, 2:3])


# ---------------------------------------------------------------------------
# forward pass (mirrors HyperionDNN.forward)
# ---------------------------------------------------------------------------
def hyperion_forward(packed, x_nchw):
    B, CIN, H, W = x_nchw.shape
    M = B * H * W
    C = packed["bnc1"].shape[1]
    L = packed["bns"].shape[0]
    CINP = packed["wc1"].shape[0] // 9
    NC = 9 * C
    assert L >= 1 and packed["w1t"].shape[0] == M

    # layers per grid step (amortizes ~0.35 us per-step overhead, bigger weight DMAs)
    LPS = max(d for d in (4, 2, 1) if L % d == 0)
    steps = L // LPS

    x = jnp.transpose(x_nchw, (0, 2, 3, 1)).astype(jnp.float32).reshape(M, CIN)
    x0 = jnp.pad(x, ((0, 0), (0, CINP - CIN)))              # channel pad -> lane aligned

    kernel = functools.partial(_fused_kernel, B=B, H=H, W=W, C=C, CINP=CINP, LPS=LPS)
    flops = int(2 * M * (9 * CINP) * C + L * 2 * (2 * M * NC * C) + 6 * M * C)
    bytes_accessed = int(x0.size * 4 + packed["masks"].size * 4
                         + packed["wc1"].size * 2 + packed["bnc1"].size * 4
                         + packed["wres"].size * 2 + packed["bns"].size * 4
                         + packed["w1t"].size * 4 + 4 * (C + 128 + 64 + 64) + B * 4)

    return pl.pallas_call(
        kernel,
        grid=(steps,),
        in_specs=[
            pl.BlockSpec((M, CINP), lambda s: (0, 0)),            # input (resident)
            pl.BlockSpec((M, 8), lambda s: (0, 0)),               # boundary masks (resident)
            pl.BlockSpec((9 * CINP, C), lambda s: (0, 0)),        # conv1 weight (resident)
            pl.BlockSpec((2, C), lambda s: (0, 0)),               # conv1 BN params
            pl.BlockSpec((2 * LPS, NC, C), lambda s: (s, 0, 0)),  # LPS layers' conv weights
            pl.BlockSpec((LPS, 4, C), lambda s: (s, 0, 0)),       # LPS layers' BN params
            pl.BlockSpec((1, C), lambda s: (0, 0)),               # conv2 (1x1) weight
            pl.BlockSpec((1, 128), lambda s: (0, 0)),             # [gamma2, beta2, b_lin2, 0]
            pl.BlockSpec((M, 64), lambda s: (0, 0)),              # tiled lin1 weight
            pl.BlockSpec((1, 64), lambda s: (0, 0)),              # lin1 bias
            pl.BlockSpec((1, 64), lambda s: (0, 0)),              # lin2 weight row
        ],
        out_specs=pl.BlockSpec((B, 1), lambda s: (0, 0)),
        out_shape=jax.ShapeDtypeStruct((B, 1), jnp.float32),
        scratch_shapes=[pltpu.VMEM((M, C), jnp.float32),          # activation carry
                        pltpu.VMEM((M, NC), jnp.bfloat16)],       # K-concat tap staging
        compiler_params=pltpu.CompilerParams(
            dimension_semantics=("arbitrary",),
            vmem_limit_bytes=32 * 1024 * 1024),
        cost_estimate=pl.CostEstimate(flops=flops,
                                      transcendentals=int((2 * L + 2) * C + B),
                                      bytes_accessed=bytes_accessed),
    )(x0, packed["masks"], packed["wc1"], packed["bnc1"], packed["wres"],
      packed["bns"], packed["wc2"], packed["misc"], packed["w1t"],
      packed["b1"], packed["w2row"])


# ---------------------------------------------------------------------------
# one-off host-side parameter prepack (pure function of params + B, H, W)
# ---------------------------------------------------------------------------
def prepack_params(params, *, B, H, W, cin_pad=128):
    C = params["conv1"]["gamma"].shape[0]
    CIN = params["conv1"]["w"].shape[2]
    L = params["res_w1"].shape[0]
    M, HW = B * H * W, H * W
    assert params["lin1"]["w"].shape[0] == HW, "lin1 expects H*W flattened features"

    # conv1 weight: (3,3,CIN,C) -> per-tap channel pad to cin_pad -> (9*cin_pad, C) bf16
    w1 = params["conv1"]["w"].astype(jnp.float32).reshape(9, CIN, C)
    w1 = jnp.pad(w1, ((0, 0), (0, cin_pad - CIN), (0, 0)))
    wc1 = w1.reshape(9 * cin_pad, C).astype(jnp.bfloat16)

    # residual weights: interleave conv-a / conv-b -> (2L, 9C, C) bf16 (one DMA stream)
    w_a = params["res_w1"].reshape(L, 9 * C, C)
    w_b = params["res_w2"].reshape(L, 9 * C, C)
    wres = jnp.stack([w_a, w_b], axis=1).reshape(2 * L, 9 * C, C).astype(jnp.bfloat16)

    # per-row boundary masks for the 8 off-centre taps, row order (b, h, w)
    r = np.arange(M)
    hh, ww = (r // W) % H, r % W
    cols = []
    for dh in (-1, 0, 1):
        for dw in (-1, 0, 1):
            if dh == 0 and dw == 0:
                continue
            cols.append(((hh + dh >= 0) & (hh + dh < H) &
                         (ww + dw >= 0) & (ww + dw < W)).astype(np.float32))
    masks = jnp.asarray(np.stack(cols, axis=1))                     # (M, 8)

    p2, l1, l2 = params["conv2"], params["lin1"], params["lin2"]
    misc = jnp.concatenate([p2["gamma"], p2["beta"], l2["b"],
                            jnp.zeros((125,), jnp.float32)]).reshape(1, 128)
    # NOTE: pre-BN conv biases are omitted on the Pallas path; a per-channel constant
    # added before training-mode BN is exactly cancelled by the mean subtraction.
    return dict(
        wc1=wc1,
        bnc1=jnp.stack([params["conv1"]["gamma"], params["conv1"]["beta"]]),
        wres=wres,
        bns=params["res_bn"],
        masks=masks,
        wc2=p2["w"].reshape(1, C).astype(jnp.float32),
        misc=misc,
        w1t=jnp.tile(l1["w"], (B, 1)),                              # (M, 64): W1[r % HW]
        b1=l1["b"].reshape(1, 64),
        w2row=l2["w"].reshape(1, 64))


# ---------------------------------------------------------------------------
# pure-JAX reference (lax.conv) for validation.  3x3-conv matmul inputs are cast
# to bf16 exactly as in the kernel; all accumulation / BN / head math is f32.
# ---------------------------------------------------------------------------
def reference_forward(params, x_nchw):
    x = jnp.transpose(x_nchw, (0, 2, 3, 1)).astype(jnp.float32)
    HI = lax.Precision.HIGHEST

    def conv(xh, w_hwio, pad):
        xh = xh.astype(jnp.bfloat16).astype(jnp.float32)    # mirror kernel numerics
        return lax.conv_general_dilated(
            xh, w_hwio.astype(jnp.float32), window_strides=(1, 1),
            padding=[(pad, pad), (pad, pad)],
            dimension_numbers=("NHWC", "HWIO", "NHWC"), precision=HI)

    def bn(y, gamma, beta):
        mean = jnp.mean(y, axis=(0, 1, 2), keepdims=True)
        var = jnp.mean((y - mean) ** 2, axis=(0, 1, 2), keepdims=True)
        return (y - mean) * (gamma * lax.rsqrt(var + BN_EPS)) + beta

    p = params["conv1"]
    y = jax.nn.relu(bn(conv(x, p["w"], 1) + p["b"], p["gamma"], p["beta"]))
    for l in range(params["res_w1"].shape[0]):
        g1, b1, g2, b2 = (params["res_bn"][l, i] for i in range(4))
        h = jax.nn.relu(bn(conv(y, params["res_w1"][l], 1), g1, b1))
        h = bn(conv(h, params["res_w2"][l], 1), g2, b2)
        y = jax.nn.relu(h + y)

    p = params["conv2"]
    z = jnp.sum(y * p["w"].astype(jnp.float32), axis=-1, keepdims=True) + p["b"]
    y = jax.nn.relu(bn(z, p["gamma"], p["beta"]))
    B, H, W, _ = x.shape
    flat = y.reshape(B, H * W)
    l1, l2 = params["lin1"], params["lin2"]
    h = jax.nn.relu(jnp.dot(flat, l1["w"], precision=HI) + l1["b"])
    return jnp.tanh(jnp.dot(h, l2["w"], precision=HI) + l2["b"])


# ---------------------------------------------------------------------------
# deterministic parameter init (shapes per HyperionDNN.__init__)
# ---------------------------------------------------------------------------
def init_params(key, num_residual_layers, in_channels=20, channels=256, spatial=8):
    L, C, CIN = num_residual_layers, channels, in_channels
    ks = jax.random.split(key, 18)

    def nrm(k, shape, fan_in):
        return jax.random.normal(k, shape, jnp.float32) / np.sqrt(fan_in)

    return {
        "conv1": dict(
            w=nrm(ks[0], (3, 3, CIN, C), 9 * CIN).astype(jnp.bfloat16),
            b=0.01 * jax.random.normal(ks[1], (C,), jnp.float32),
            gamma=1.0 + 0.1 * jax.random.normal(ks[2], (C,), jnp.float32),
            beta=0.1 * jax.random.normal(ks[3], (C,), jnp.float32)),
        "res_w1": nrm(ks[4], (L, 3, 3, C, C), 9 * C).astype(jnp.bfloat16),
        "res_w2": nrm(ks[5], (L, 3, 3, C, C), 9 * C).astype(jnp.bfloat16),
        "res_bn": jnp.stack([
            1.0 + 0.1 * jax.random.normal(ks[6], (L, C), jnp.float32),
            0.1 * jax.random.normal(ks[7], (L, C), jnp.float32),
            1.0 + 0.1 * jax.random.normal(ks[8], (L, C), jnp.float32),
            0.1 * jax.random.normal(ks[9], (L, C), jnp.float32)], axis=1),   # (L, 4, C)
        "conv2": dict(
            w=nrm(ks[10], (C,), C),
            b=0.01 * jax.random.normal(ks[11], (1,), jnp.float32),
            gamma=1.0 + 0.1 * jax.random.normal(ks[12], (1,), jnp.float32),
            beta=0.1 * jax.random.normal(ks[13], (1,), jnp.float32)),
        "lin1": dict(w=nrm(ks[14], (spatial * spatial, 64), spatial * spatial),
                     b=0.01 * jax.random.normal(ks[15], (64,), jnp.float32)),
        "lin2": dict(w=nrm(ks[16], (64, 1), 64),
                     b=0.01 * jax.random.normal(ks[17], (1,), jnp.float32)),
    }


if __name__ == "__main__":
    key = jax.random.PRNGKey(0)
    pkey, xkey = jax.random.split(key)

    # lin1 expects 64 flattened features after the 1-channel conv2 -> H = W = 8.
    B, CIN, H, W = 2, 20, 8, 8
    NUM_RESIDUAL_LAYERS = 20                       # HyperionDNN default depth

    params = init_params(pkey, NUM_RESIDUAL_LAYERS, in_channels=CIN, spatial=H)
    x = jax.random.normal(xkey, (B, CIN, H, W), jnp.float32)   # NCHW, as in PyTorch

    packed = prepack_params(params, B=B, H=H, W=W)             # one-off host prep
    fwd = jax.jit(hyperion_forward)
    out = jax.block_until_ready(fwd(packed, x))

    ref = jax.block_until_ready(jax.jit(reference_forward)(params, x))
    assert out.shape == (B, 1)
    assert bool(jnp.all(jnp.isfinite(out)))
    np.testing.assert_allclose(np.asarray(out), np.asarray(ref), rtol=5e-3, atol=5e-3)

    print("KERNEL_OK")
</pallas_src>

<mosaic_0001>
module attributes {stable_mosaic.version = 11 : i64} {
  func.func @k(%arg0: i32, %arg1: memref<8x128xf32, #tpu.memory_space<vmem>>, %arg2: memref<8x128xf32, #tpu.memory_space<vmem>>) attributes {dimension_semantics = [#tpu.dimension_semantics<arbitrary>], iteration_bounds = array<i64: 1>, scalar_prefetch = 0 : i64, scratch_operands = 0 : i64, tpu.core_type = #tpu.core_type<tc>, window_params = [{pipeline_mode = #tpu.pipeline_mode<synchronous>, transform_indices = @transform_0, window_bounds = array<i64: 8, 128>}, {pipeline_mode = #tpu.pipeline_mode<synchronous>, transform_indices = @transform_1, window_bounds = array<i64: 8, 128>}]} {
    %c0 = arith.constant 0 : index
    %c0_0 = arith.constant 0 : index
    %0 = vector.load %arg1[%c0, %c0_0] : memref<8x128xf32, #tpu.memory_space<vmem>>, vector<8x128xf32>
    %c1_i32 = arith.constant 1 : i32
    %1 = tpu.dynamic_rotate %0 by %c1_i32 dim 0 : vector<8x128xf32>, i32 -> vector<8x128xf32>
    %c0_1 = arith.constant 0 : index
    %c0_2 = arith.constant 0 : index
    %2 = vector.load %arg2[%c0_1, %c0_2] : memref<8x128xf32, #tpu.memory_space<vmem>>, vector<8x128xf32>
    tpu.vector_store %arg2[%c0_1, %c0_2], %1 {strides = array<i32>} : memref<8x128xf32, #tpu.memory_space<vmem>>, vector<8x128xf32>,
    return
  }
  func.func @transform_0(%arg0: i32) -> (i32, i32) {
    %c0_i32 = arith.constant 0 : i32
    %c0_i32_0 = arith.constant 0 : i32
    %c0_i32_1 = arith.constant 0 : i32
    return %c0_i32, %c0_i32_0 : i32, i32
  }
  func.func @transform_1(%arg0: i32) -> (i32, i32) {
    %c0_i32 = arith.constant 0 : i32
    %c0_i32_0 = arith.constant 0 : i32
    %c0_i32_1 = arith.constant 0 : i32
    return %c0_i32, %c0_i32_0 : i32, i32
  }
}

</mosaic_0001>

<llo_original>
// kernel: tpu_custom_call.1
$region0: #{tpu_custom_call.1}
  #allocation0 [shape = 'u32[]', space=smem, size = 0x4, offset = 0x4, fixed_abs, tag = 'smem constant byte address 0x4 - core index']
  #allocation1 [shape = 'u32[144,128]{1,0:T(1,128)}', space=vmem, size = 0x12000, scoped, tag = 'internal scratch']
  %s0 = inlined_call_operand.hbm [shape: f32[8,128], index: 0, kind: input, shape index: {}]
  %s1 = inlined_call_operand.hbm [shape: f32[8,128], index: 1, kind: output, shape index: {}]
  %s2 = sld [smem:[#allocation0]]
  $region18: #{tpu_custom_call.1} parent=0
    _
  %s4 = ssub.s32 1, %s2
  %s5 = scalar_select 0, %s4, %s2
  $region1: #{tpu_custom_call.1} parent=0
    #allocation2 [shape = 'u8[4096]{0}', space=vmem, size = 0x1000, scoped, tag = 'input window, operand 0, single buffered']
    #allocation3 [shape = 's32[1]{0}', space=sflag, size = 0x4, scoped, tag = 'scoped memory for tpu_custom_call.1']
    #allocation4 [shape = 's32[1]{0}', space=sflag, size = 0x4, scoped, tag = 'scoped memory for tpu_custom_call.1']
    #allocation5 [shape = 'u8[4096]{0}', space=vmem, size = 0x1000, scoped, tag = 'output window, operand 0, single buffered']
    %6 = vsyncpa [#allocation3], 0
    %7 = vsyncpa [#allocation4], 0
    // Predicated region
    $region2: #{tpu_custom_call.1} parent=1 // pred_check
      _
    $region3: #{tpu_custom_call.1} parent=1 // pred_check_branch
      %9 = sbr.rel (0) target = $region5
    $region4: #{tpu_custom_call.1} parent=1 // pred_region
      %s11 = ssub.s32 128, 128
      %12 = vsyncadd [#allocation3], %s11
      %s14 = sshll.u32 [#allocation2], 4
      %s15 = int_to_ptr.vmem [resolvable:$true] %s14
      %17 = dma.hbm_to_vmem [thread:$0]  %s0, 128, %s15, [#allocation3]
    $region5: #{tpu_custom_call.1} parent=1 // pred_fallthru
      _
    // Predicated region
    $region6: #{tpu_custom_call.1} parent=1 // pred_check
      _
    $region7: #{tpu_custom_call.1} parent=1 // pred_check_branch
      %19 = sbr.rel (0) target = $region9
    $region8: #{tpu_custom_call.1} parent=1 // pred_region
      %20 = dma.done [#allocation3], 128
    $region9: #{tpu_custom_call.1} parent=1 // pred_fallthru
      _
    %v21 = vld [vmem:[#allocation2] sm:$0xff]
    %v22 = vrot.slane %v21, 7
    %23 = vst [vmem:[#allocation5] sm:$0xff] %v22
    // Predicated region
    $region10: #{tpu_custom_call.1} parent=1 // pred_check
      _
    $region11: #{tpu_custom_call.1} parent=1 // pred_check_branch
      %25 = sbr.rel (0) target = $region13
    $region12: #{tpu_custom_call.1} parent=1 // pred_region
      %s27 = ssub.s32 128, 128
      %28 = vsyncadd [#allocation4], %s27
      %s30 = sshll.u32 [#allocation5], 4
      %s31 = int_to_ptr.vmem [resolvable:$true] %s30
      %33 = dma.vmem_to_hbm [thread:$0]  %s31, 128, %s1, [#allocation4]
    $region13: #{tpu_custom_call.1} parent=1 // pred_fallthru
      _
    // Predicated region
    $region14: #{tpu_custom_call.1} parent=1 // pred_check
      _
    $region15: #{tpu_custom_call.1} parent=1 // pred_check_branch
      %35 = sbr.rel (0) target = $region17
    $region16: #{tpu_custom_call.1} parent=1 // pred_region
      %36 = dma.done [#allocation4], 128
    $region17: #{tpu_custom_call.1} parent=1 // pred_fallthru
      _
    %37 = vsyncpa [#allocation3], 1
    %38 = vsyncpa [#allocation4], 1

</llo_original>
